<compile_context>
chip_gen: v5e
topology: v5e:2x2
jax: 0.10.0
libtpu: 0.0.40
codegen_flags: <defaults>
</compile_context>

<pallas_src>
import jax
import jax.numpy as jnp
from jax.experimental import pallas as pl
from jax.experimental.pallas import tpu as pltpu

_LANE = 128                      # lane axis width
_MAX_LANE_DIM = 2048             # widest lane-dense last dim we reshape to
_TILE_BYTES = 8 * 1024 * 1024    # per-block VMEM budget, dtype independent
_VMEM_LIMIT = 48 * 1024 * 1024   # 2x in + 2x out 8 MiB buffers + headroom (<64 MiB v7x)


def _h_swish_kernel(x_ref, o_ref):
    # h_sigmoid(x) = relu6(x + 3) / 6 ; h_swish(x) = x * h_sigmoid(x)
    # Compute in f32: costless for this HBM-bound kernel, avoids bf16 rounding
    # of the 1/6 constant for low-precision inputs.
    x = x_ref[...].astype(jnp.float32)
    hsig = jnp.clip(x + 3.0, 0.0, 6.0) * (1.0 / 6.0)
    o_ref[...] = (x * hsig).astype(o_ref.dtype)


def _pick_lane_dim(total: int) -> int:
    """Widest multiple of 128 that divides `total` (capped); 0 if none."""
    for cand in range(_MAX_LANE_DIM, 0, -_LANE):
        if total % cand == 0:
            return cand
    return 0


def _dimension_semantics():
    # On v7x (2 TensorCores/chip, per-TC HBM bandwidth) only CORE_PARALLEL
    # genuinely splits the grid across TCs; plain "parallel" barely changes
    # codegen. Guarded by a core-count probe so single-TC chips (v5e/v6e)
    # keep the known-good path.
    try:
        n_cores = int(getattr(jax.devices()[0], "num_cores", 1) or 1)
    except Exception:
        n_cores = 1
    if n_cores > 1 and hasattr(pltpu, "CORE_PARALLEL"):
        return (pltpu.CORE_PARALLEL,)
    return ("parallel",)


def h_swish(x: jax.Array, *, donate: bool = False) -> jax.Array:
    """Elementwise h_swish over a tensor of any shape (NCHW in the module)."""
    orig_shape = x.shape
    dtype = x.dtype
    total = x.size
    itemsize = jnp.dtype(dtype).itemsize
    # Sublane alignment multiple depends on dtype packing (f32: 8, bf16: 16, i8: 32).
    sub = max(8, 32 // itemsize)

    w = _pick_lane_dim(total)
    padded = False
    if w == 0:
        # Ragged total (not a multiple of 128) - rare for conv feature maps.
        # TODO(synk): handle the ragged tail inside the kernel (masked last
        # block / SMEM `total` scalar) to drop this pad + slice HBM round trip.
        pad = (-total) % _LANE
        flat = jnp.pad(x.reshape(-1), (0, pad))  # h_swish(0) == 0 -> benign
        w = _LANE
        padded = True
    else:
        flat = x.reshape(-1)  # zero-copy in the common case

    rows = flat.size // w
    slab = flat.reshape(rows, w)

    # Byte-based block sizing: same MiB-scale block for every dtype.
    rows_per_tile = max(sub, _TILE_BYTES // (w * itemsize))
    rows_per_tile -= rows_per_tile % sub  # keep (sub, 128)-aligned block shape
    if rows <= rows_per_tile:
        tr = rows              # single block spanning the full row extent (always legal)
    else:
        tr = rows_per_tile     # multiple of `sub`; ragged final block is masked
    grid = (pl.cdiv(rows, tr),)

    cost = pl.CostEstimate(
        flops=5 * total,
        transcendentals=0,
        bytes_accessed=2 * total * itemsize,
    )

    extra_kwargs = {}
    if donate:
        # Output reuses the input buffer when the caller donates x.
        extra_kwargs["input_output_aliases"] = {0: 0}

    out = pl.pallas_call(
        _h_swish_kernel,
        out_shape=jax.ShapeDtypeStruct((rows, w), dtype),
        grid_spec=pltpu.PrefetchScalarGridSpec(
            num_scalar_prefetch=0,
            grid=grid,
            in_specs=[pl.BlockSpec((tr, w), lambda i: (i, 0))],
            out_specs=pl.BlockSpec((tr, w), lambda i: (i, 0)),
        ),
        compiler_params=pltpu.CompilerParams(
            dimension_semantics=_dimension_semantics(),
            vmem_limit_bytes=_VMEM_LIMIT,
        ),
        cost_estimate=cost,
        **extra_kwargs,
    )(slab)

    flat_out = out.reshape(-1)
    if padded:
        flat_out = flat_out[:total]
    return flat_out.reshape(orig_shape)


def _ref_h_swish(x):
    xf = x.astype(jnp.float32)
    return (xf * (jnp.clip(xf + 3.0, 0.0, 6.0) / 6.0)).astype(x.dtype)


if __name__ == "__main__":
    key = jax.random.PRNGKey(0)

    # NCHW input, matching the PyTorch module's conv-style layout.
    x = jax.random.normal(key, (2, 4, 16, 16), dtype=jnp.float32) * 4.0
    y = jax.block_until_ready(h_swish(x))
    assert y.shape == x.shape and y.dtype == x.dtype
    assert jnp.max(jnp.abs(y - _ref_h_swish(x))) < 1e-5

    # bf16 path (in-kernel f32 upcast) — loose tolerance for the bf16 store.
    xb = x.astype(jnp.bfloat16)
    yb = jax.block_until_ready(h_swish(xb))
    assert yb.dtype == jnp.bfloat16
    assert jnp.max(jnp.abs(yb.astype(jnp.float32)
                           - _ref_h_swish(xb).astype(jnp.float32))) < 5e-2

    # Ragged total (105 elements) exercises the padded fallback path.
    xr = jax.random.normal(jax.random.PRNGKey(1), (3, 5, 7), dtype=jnp.float32) * 4.0
    yr = jax.block_until_ready(h_swish(xr))
    assert yr.shape == xr.shape
    assert jnp.max(jnp.abs(yr - _ref_h_swish(xr))) < 1e-5

    print("KERNEL_OK")
</pallas_src>

<mosaic_0001>
module attributes {stable_mosaic.version = 11 : i64} {
  func.func @_h_swish_kernel(%arg0: i32, %arg1: memref<1x2048xf32, #tpu.memory_space<vmem>>, %arg2: memref<1x2048xf32, #tpu.memory_space<vmem>>) attributes {dimension_semantics = [#tpu.dimension_semantics<parallel>], iteration_bounds = array<i64: 1>, scalar_prefetch = 0 : i64, scratch_operands = 0 : i64, tpu.core_type = #tpu.core_type<tc>, window_params = [{transform_indices = @transform_0, window_bounds = array<i64: 1, 2048>}, {transform_indices = @transform_1, window_bounds = array<i64: 1, 2048>}]} {
    %c0 = arith.constant 0 : index
    %c0_0 = arith.constant 0 : index
    %0 = vector.load %arg1[%c0, %c0_0] : memref<1x2048xf32, #tpu.memory_space<vmem>>, vector<1x2048xf32>
    %cst = arith.constant 3.000000e+00 : f32
    %1 = vector.broadcast %cst : f32 to vector<1x2048xf32>
    %2 = arith.addf %0, %1 : vector<1x2048xf32>
    %cst_1 = arith.constant 0.000000e+00 : f32
    %cst_2 = arith.constant 6.000000e+00 : f32
    %3 = vector.broadcast %cst_1 : f32 to vector<1x2048xf32>
    %4 = arith.maximumf %3, %2 : vector<1x2048xf32>
    %5 = vector.broadcast %cst_2 : f32 to vector<1x2048xf32>
    %6 = arith.minimumf %5, %4 : vector<1x2048xf32>
    %cst_3 = arith.constant 0.166666672 : f32
    %7 = vector.broadcast %cst_3 : f32 to vector<1x2048xf32>
    %8 = arith.mulf %6, %7 : vector<1x2048xf32>
    %9 = arith.mulf %0, %8 : vector<1x2048xf32>
    %c0_4 = arith.constant 0 : index
    %c0_5 = arith.constant 0 : index
    %10 = vector.load %arg2[%c0_4, %c0_5] : memref<1x2048xf32, #tpu.memory_space<vmem>>, vector<1x2048xf32>
    tpu.vector_store %arg2[%c0_4, %c0_5], %9 {strides = array<i32>} : memref<1x2048xf32, #tpu.memory_space<vmem>>, vector<1x2048xf32>,
    return
  }
  func.func @transform_0(%arg0: i32) -> (i32, i32) {
    %c0_i32 = arith.constant 0 : i32
    %c0_i32_0 = arith.constant 0 : i32
    return %arg0, %c0_i32 : i32, i32
  }
  func.func @transform_1(%arg0: i32) -> (i32, i32) {
    %c0_i32 = arith.constant 0 : i32
    %c0_i32_0 = arith.constant 0 : i32
    return %arg0, %c0_i32 : i32, i32
  }
}

</mosaic_0001>

<llo_original>
// kernel: tpu_custom_call.1
$region0: #{tpu_custom_call.1}
  #allocation0 [shape = 'u32[]', space=smem, size = 0x4, offset = 0x4, fixed_abs, tag = 'smem constant byte address 0x4 - core index']
  #allocation1 [shape = 'u32[72,128]{1,0:T(1,128)}', space=vmem, size = 0x9000, scoped, tag = 'internal scratch']
  %s0 = inlined_call_operand.hbm [shape: f32[1,2048], index: 0, kind: input, shape index: {}]
  %s1 = inlined_call_operand.hbm [shape: f32[1,2048], index: 1, kind: output, shape index: {}]
  %s2 = sld [smem:[#allocation0]]
  $region18: #{tpu_custom_call.1} parent=0
    _
  %s4 = ssub.s32 1, %s2
  %s5 = scalar_select 0, %s4, %s2
  $region1: #{tpu_custom_call.1} parent=0
    #allocation2 [shape = 'u8[8192]{0}', space=vmem, size = 0x2000, scoped, tag = 'input window, operand 0, single buffered']
    #allocation3 [shape = 's32[1]{0}', space=sflag, size = 0x4, scoped, tag = 'scoped memory for tpu_custom_call.1']
    #allocation4 [shape = 's32[1]{0}', space=sflag, size = 0x4, scoped, tag = 'scoped memory for tpu_custom_call.1']
    #allocation5 [shape = 'u8[8192]{0}', space=vmem, size = 0x2000, scoped, tag = 'output window, operand 0, single buffered']
    %6 = vsyncpa [#allocation3], 0
    %7 = vsyncpa [#allocation4], 0
    // Predicated region
    $region2: #{tpu_custom_call.1} parent=1 // pred_check
      _
    $region3: #{tpu_custom_call.1} parent=1 // pred_check_branch
      %9 = sbr.rel (0) target = $region5
    $region4: #{tpu_custom_call.1} parent=1 // pred_region
      %11 = vsyncadd [#allocation3], 0
      %s13 = sshll.u32 %s0, 4
      %s14 = int_to_ptr.hbm [resolvable:$true] %s13
      %s15 = sshll.u32 [#allocation2], 4
      %s16 = int_to_ptr.vmem [resolvable:$true] %s15
      %18 = dma.hbm_to_vmem [thread:$0]  %s14, 256, %s16, [#allocation3]
    $region5: #{tpu_custom_call.1} parent=1 // pred_fallthru
      _
    // Predicated region
    $region6: #{tpu_custom_call.1} parent=1 // pred_check
      _
    $region7: #{tpu_custom_call.1} parent=1 // pred_check_branch
      %20 = sbr.rel (0) target = $region9
    $region8: #{tpu_custom_call.1} parent=1 // pred_region
      %22 = dma.done [#allocation3], 256
    $region9: #{tpu_custom_call.1} parent=1 // pred_fallthru
      _
    %v23 = vld [vmem:[#allocation2] sm:$0xff]
    %v24 = vld [vmem:[#allocation2 + $0x8] sm:$0xff]
    %v25 = vadd.f32 %v23, 3.0
    %v26 = vadd.f32 %v24, 3.0
    %v27 = vmax.f32 %v25, 0.0
    %v28 = vmax.f32 %v26, 0.0
    %v29 = vmin.f32 %v27, 6.0
    %v30 = vmin.f32 %v28, 6.0
    %v31 = vmul.f32 %v29, 0.16666667
    %v32 = vmul.f32 %v30, 0.16666667
    %v33 = vmul.f32 %v23, %v31
    %v34 = vmul.f32 %v24, %v32
    %35 = vst [vmem:[#allocation5] sm:$0xff] %v33
    %36 = vst [vmem:[#allocation5 + $0x8] sm:$0xff] %v34
    // Predicated region
    $region10: #{tpu_custom_call.1} parent=1 // pred_check
      _
    $region11: #{tpu_custom_call.1} parent=1 // pred_check_branch
      %38 = sbr.rel (0) target = $region13
    $region12: #{tpu_custom_call.1} parent=1 // pred_region
      %40 = vsyncadd [#allocation4], 0
      %s42 = sshll.u32 [#allocation5], 4
      %s43 = int_to_ptr.vmem [resolvable:$true] %s42
      %s44 = sshll.u32 %s1, 4
      %s45 = int_to_ptr.hbm [resolvable:$true] %s44
      %47 = dma.vmem_to_hbm [thread:$0]  %s43, 256, %s45, [#allocation4]
    $region13: #{tpu_custom_call.1} parent=1 // pred_fallthru
      _
    // Predicated region
    $region14: #{tpu_custom_call.1} parent=1 // pred_check
      _
    $region15: #{tpu_custom_call.1} parent=1 // pred_check_branch
      %49 = sbr.rel (0) target = $region17
    $region16: #{tpu_custom_call.1} parent=1 // pred_region
      %51 = dma.done [#allocation4], 256
    $region17: #{tpu_custom_call.1} parent=1 // pred_fallthru
      _
    %52 = vsyncpa [#allocation3], 1
    %53 = vsyncpa [#allocation4], 1

</llo_original>
